<compile_context>
chip_gen: v6e
topology: v6e:2x2x1
jax: 0.10.0
libtpu: 0.0.40
codegen_flags: <defaults>
</compile_context>

<pallas_src>
import jax
import jax.numpy as jnp
from jax.experimental import pallas as pl
from jax.experimental.pallas import tpu as pltpu


def _round_up(a: int, b: int) -> int:
    return (a + b - 1) // b * b


def _vmem_capacity_bytes() -> int:
    try:
        info = pltpu.get_tpu_info()
        cap = getattr(info, "vmem_capacity_bytes", None)
        if cap:
            return int(cap)
    except Exception:
        pass
    return 64 * 1024 * 1024  # conservative default (v7x per-TensorCore VMEM)


def _erf_kernel(x):
    # Abramowitz & Stegun 7.1.26 polynomial erf (|err| < 1.5e-7).
    # abs + approx-reciprocal keep the divide / sign tricks off the VALU slot.
    a1, a2, a3, a4, a5 = 0.254829592, -0.284496736, 1.421413741, -1.453152027, 1.061405429
    p = 0.3275911
    z = jnp.abs(x)
    t = pl.reciprocal(1.0 + p * z, approx=True)           # EUP, not VALU divide
    poly = ((((a5 * t + a4) * t + a3) * t + a2) * t + a1) * t
    e = 1.0 - poly * jnp.exp(-z * z)
    return jnp.where(x >= 0, e, -e)


def _gelu_erf_kernel(x):
    # Matches nn.GELU() (exact, erf-based) to ~1e-4 absolute.
    return 0.5 * x * (1.0 + _erf_kernel(x * 0.7071067811865476))


def ffn_kernel(x_ref, w1_ref, b1_ref, w2_ref, b2_ref, o_ref, acc_ref):
    # x_ref : (tm, Dp)  input dtype        w1_ref: (Dp, th) bf16   b1_ref: (1, th) f32
    # w2_ref: (th, Dp)  bf16               b2_ref: (1, Dp) f32
    # o_ref : (tm, Dp)  input dtype        acc_ref: (tm, Dp) f32 scratch
    k = pl.program_id(1)

    @pl.when(k == 0)
    def _init():
        acc_ref[...] = jnp.zeros_like(acc_ref)

    x = x_ref[...].astype(jnp.bfloat16)                    # bf16 into the MXU (no-op if x is bf16)
    h = jnp.dot(x, w1_ref[...], preferred_element_type=jnp.float32) + b1_ref[...]
    g = _gelu_erf_kernel(h)                                # f32 elementwise (VPU/EUP)
    # TODO(synk): nn.Dropout is identity here (p=0.0 / eval); training-mode dropout
    # would use pltpu.prng_seed + pltpu.stateful_bernoulli.
    acc_ref[...] += jnp.dot(g.astype(jnp.bfloat16), w2_ref[...],
                            preferred_element_type=jnp.float32)

    @pl.when(k == pl.num_programs(1) - 1)
    def _finalize():
        o_ref[...] = (acc_ref[...] + b2_ref[...]).astype(o_ref.dtype)


def feed_forward(x, w1, b1, w2, b2, *, tm_max=512, vmem_budget_bytes=None,
                 hidden_tile=None):
    """Fused FFN: gelu(x @ w1 + b1) @ w2 + b2.

    x : (B, N, D)
    w1: (D, H)  -- PyTorch linear1.weight.T (transpose once at parameter-load time)
    b1: (H,)
    w2: (H, D)  -- PyTorch linear2.weight.T
    b2: (D,)
    hidden_tile: optional forced H-tile (multiple of 128) for the streaming path.
    """
    B, N, D = x.shape
    H = w1.shape[1]
    assert w1.shape == (D, H) and w2.shape == (H, D)
    assert b1.shape == (H,) and b2.shape == (D,)

    R = B * N
    Dp = _round_up(D, 128)                                 # lane-dense feature dim
    Hp = _round_up(H, 128)
    itemsize = x.dtype.itemsize

    capacity = _vmem_capacity_bytes()
    if vmem_budget_bytes is None:
        vmem_budget_bytes = int(0.70 * capacity)           # generation-aware budget

    # ---- tile selection --------------------------------------------------
    # Aim for >= ~4 row-grid steps so v7x's 2 TensorCores both get work and the
    # x/out pipeline has depth; 16-aligned so bf16 sublane packing is not wasted.
    tm_target = max(16, min(tm_max, _round_up((R + 3) // 4, 16)))

    def vmem_bytes(tm, th, nk):
        wbuf = 1 if nk == 1 else 2                         # resident weights single-buffered
        return (2 * tm * Dp * itemsize                     # x tiles (double-buffered)
                + 2 * tm * Dp * itemsize                   # out tiles (double-buffered)
                + wbuf * 2 * Dp * th * 2                   # w1 + w2 bf16 tiles
                + wbuf * 8 * (th + Dp) * 4                 # biases (sublane-padded)
                + tm * Dp * 4                              # f32 accumulator scratch
                + 3 * tm * th * 4)                         # f32 hidden temporaries

    def fits(tm, th, nk):
        return vmem_bytes(tm, th, nk) <= vmem_budget_bytes

    if hidden_tile is not None:
        assert hidden_tile % 128 == 0 and hidden_tile > 0
        th_candidates = [min(hidden_tile, Hp)]
    else:
        th_candidates = [Hp] + [t for t in (8192, 4096, 2048, 1024, 512, 256, 128)
                                if t < Hp]

    tm = th = Hpad = nk = None
    for th_c in th_candidates:
        Hpad_c = _round_up(H, th_c)
        nk_c = Hpad_c // th_c
        tm_c = tm_target
        while tm_c > 16 and not fits(tm_c, th_c, nk_c):
            tm_c = max(16, ((tm_c // 2) + 15) // 16 * 16)
        if fits(tm_c, th_c, nk_c):
            tm, th, Hpad, nk = tm_c, th_c, Hpad_c, nk_c
            break
    if tm is None:
        # Smallest sane tiles; only reachable for extreme dims.
        th = 128
        Hpad = _round_up(H, th)
        nk = Hpad // th
        tm = 16

    Rp = _round_up(R, tm)

    # ---- padding (only when actually needed; O(tm*D) for rows) -----------
    xf = x.reshape(R, D)
    if Rp != R or Dp != D:
        xf = jnp.pad(xf, ((0, Rp - R), (0, Dp - D)))

    def pad2(a, r, c):
        return a if a.shape == (r, c) else jnp.pad(a, ((0, r - a.shape[0]),
                                                       (0, c - a.shape[1])))

    w1p = pad2(w1, Dp, Hpad).astype(jnp.bfloat16)
    w2p = pad2(w2, Hpad, Dp).astype(jnp.bfloat16)
    b1p = pad2(b1.astype(jnp.float32).reshape(1, H), 1, Hpad)
    b2p = pad2(b2.astype(jnp.float32).reshape(1, D), 1, Dp)

    # ---- compiler hints ----------------------------------------------------
    est = vmem_bytes(tm, th, nk)
    vmem_limit = int(min(0.85 * capacity, max(32 * 1024 * 1024, 2 * est)))

    n_row_steps = Rp // tm
    weight_passes = 1 if nk == 1 else n_row_steps
    cost = pl.CostEstimate(
        flops=4 * Rp * Dp * Hpad,                           # two matmuls
        transcendentals=2 * Rp * Hpad,                      # exp + approx reciprocal
        bytes_accessed=(2 * Rp * Dp * itemsize              # read x + write out
                        + weight_passes * 2 * Dp * Hpad * 2 # bf16 weights
                        + (Hpad + Dp) * 4))                 # biases

    def build_call(single_buffer_resident):
        def spec(shape, index_map, resident):
            if resident and single_buffer_resident:
                return pl.BlockSpec(shape, index_map, pipeline_mode=pl.Buffered(1))
            return pl.BlockSpec(shape, index_map)

        in_specs = [
            spec((tm, Dp), lambda i, k: (i, 0), False),      # x tile
            spec((Dp, th), lambda i, k: (0, k), nk == 1),    # w1 (resident iff nk==1)
            spec((1, th), lambda i, k: (0, k), nk == 1),     # b1
            spec((th, Dp), lambda i, k: (k, 0), nk == 1),    # w2
            spec((1, Dp), lambda i, k: (0, 0), True),        # b2 (always constant)
        ]
        return pl.pallas_call(
            ffn_kernel,
            out_shape=jax.ShapeDtypeStruct((Rp, Dp), x.dtype),
            grid_spec=pltpu.PrefetchScalarGridSpec(
                num_scalar_prefetch=0,
                grid=(n_row_steps, nk),
                in_specs=in_specs,
                out_specs=pl.BlockSpec((tm, Dp), lambda i, k: (i, 0)),
                scratch_shapes=[pltpu.VMEM((tm, Dp), jnp.float32)],
            ),
            compiler_params=pltpu.CompilerParams(
                dimension_semantics=("parallel", "arbitrary"),
                vmem_limit_bytes=vmem_limit,
            ),
            cost_estimate=cost,
        )

    try:
        out = build_call(True)(xf, w1p, b1p, w2p, b2p)
    except Exception:
        # Fall back to default double-buffering if pl.Buffered(1) is rejected
        # on this JAX/Mosaic version.
        out = build_call(False)(xf, w1p, b1p, w2p, b2p)

    if Rp != R or Dp != D:
        out = out[:R, :D]
    return out.reshape(B, N, D)


# ----------------------------- references ------------------------------------
def feed_forward_reference(x, w1, b1, w2, b2):
    # Pure f32 module semantics (nn.GELU exact).
    h = jnp.einsum("bnd,dh->bnh", x, w1) + b1
    g = jax.nn.gelu(h, approximate=False)
    return jnp.einsum("bnh,hd->bnd", g, w2) + b2


def feed_forward_reference_bf16(x, w1, b1, w2, b2):
    # Mirrors the kernel's bf16 MXU operands / f32 accumulation for a tight check.
    h = jnp.einsum("bnd,dh->bnh", x.astype(jnp.bfloat16), w1.astype(jnp.bfloat16),
                   preferred_element_type=jnp.float32) + b1
    g = jax.nn.gelu(h, approximate=False)
    return jnp.einsum("bnh,hd->bnd", g.astype(jnp.bfloat16), w2.astype(jnp.bfloat16),
                      preferred_element_type=jnp.float32) + b2


if __name__ == "__main__":
    key = jax.random.PRNGKey(0)
    (kx, kw1, kb1, kw2, kb2,
     kx2, kw3, kb3, kw4, kb4) = jax.random.split(key, 10)

    # ---- Case 1: resident-weight path (single H tile) -----------------------
    B, N, dim, hidden_dim = 2, 8, 32, 64
    x = jax.random.normal(kx, (B, N, dim), dtype=jnp.float32)
    # Weights in "math" layout (in_features, out_features); from PyTorch pass weight.T once.
    w1 = 0.1 * jax.random.normal(kw1, (dim, hidden_dim), dtype=jnp.float32)
    b1 = 0.1 * jax.random.normal(kb1, (hidden_dim,), dtype=jnp.float32)
    w2 = 0.1 * jax.random.normal(kw2, (hidden_dim, dim), dtype=jnp.float32)
    b2 = 0.1 * jax.random.normal(kb2, (dim,), dtype=jnp.float32)

    out = feed_forward(x, w1, b1, w2, b2)
    jax.block_until_ready(out)
    assert out.shape == (B, N, dim)

    ref_bf16 = feed_forward_reference_bf16(x, w1, b1, w2, b2)  # same precision as kernel
    ref_f32 = feed_forward_reference(x, w1, b1, w2, b2)        # module semantics
    assert jnp.allclose(out, ref_bf16, atol=5e-3, rtol=2e-2), \
        float(jnp.max(jnp.abs(out - ref_bf16)))
    assert jnp.allclose(out, ref_f32, atol=5e-2, rtol=5e-2), \
        float(jnp.max(jnp.abs(out - ref_f32)))

    # ---- Case 2: H-tiled streaming path (accumulator, nk > 1) ---------------
    hidden_dim2 = 256
    x2 = jax.random.normal(kx2, (B, N, dim), dtype=jnp.float32)
    w3 = 0.1 * jax.random.normal(kw3, (dim, hidden_dim2), dtype=jnp.float32)
    b3 = 0.1 * jax.random.normal(kb3, (hidden_dim2,), dtype=jnp.float32)
    w4 = 0.1 * jax.random.normal(kw4, (hidden_dim2, dim), dtype=jnp.float32)
    b4 = 0.1 * jax.random.normal(kb4, (dim,), dtype=jnp.float32)

    out2 = feed_forward(x2, w3, b3, w4, b4, hidden_tile=128)   # forces 2 H tiles
    jax.block_until_ready(out2)
    ref2_bf16 = feed_forward_reference_bf16(x2, w3, b3, w4, b4)
    ref2_f32 = feed_forward_reference(x2, w3, b3, w4, b4)
    assert jnp.allclose(out2, ref2_bf16, atol=8e-3, rtol=2e-2), \
        float(jnp.max(jnp.abs(out2 - ref2_bf16)))
    assert jnp.allclose(out2, ref2_f32, atol=5e-2, rtol=5e-2), \
        float(jnp.max(jnp.abs(out2 - ref2_f32)))

    print("KERNEL_OK")
</pallas_src>

<mosaic_0001>
module attributes {stable_mosaic.version = 11 : i64} {
  func.func @ffn_kernel(%arg0: i32, %arg1: i32, %arg2: memref<16x128xf32, #tpu.memory_space<vmem>>, %arg3: memref<128x128xbf16, #tpu.memory_space<vmem>>, %arg4: memref<1x128xf32, #tpu.memory_space<vmem>>, %arg5: memref<128x128xbf16, #tpu.memory_space<vmem>>, %arg6: memref<1x128xf32, #tpu.memory_space<vmem>>, %arg7: memref<16x128xf32, #tpu.memory_space<vmem>>, %arg8: memref<16x128xf32, #tpu.memory_space<vmem>>) attributes {dimension_semantics = [#tpu.dimension_semantics<parallel>, #tpu.dimension_semantics<arbitrary>], iteration_bounds = array<i64: 1, 1>, scalar_prefetch = 0 : i64, scratch_operands = 1 : i64, tpu.core_type = #tpu.core_type<tc>, window_params = [{transform_indices = @transform_0, window_bounds = array<i64: 16, 128>}, {pipeline_mode = #tpu.pipeline_mode<synchronous>, transform_indices = @transform_1, window_bounds = array<i64: 128, 128>}, {pipeline_mode = #tpu.pipeline_mode<synchronous>, transform_indices = @transform_2, window_bounds = array<i64: 1, 128>}, {pipeline_mode = #tpu.pipeline_mode<synchronous>, transform_indices = @transform_3, window_bounds = array<i64: 128, 128>}, {pipeline_mode = #tpu.pipeline_mode<synchronous>, transform_indices = @transform_4, window_bounds = array<i64: 1, 128>}, {transform_indices = @transform_5, window_bounds = array<i64: 16, 128>}]} {
    %c0_i32 = arith.constant 0 : i32
    %0 = arith.cmpi eq, %arg1, %c0_i32 : i32
    %1 = arith.extui %0 : i1 to i32
    %c0_i32_0 = arith.constant 0 : i32
    %2 = arith.cmpi ne, %1, %c0_i32_0 : i32
    scf.if %2 {
      %cst_29 = arith.constant 0.000000e+00 : f32
      %58 = vector.broadcast %cst_29 : f32 to vector<16x128xf32>
      %c0_30 = arith.constant 0 : index
      %c0_31 = arith.constant 0 : index
      %59 = vector.load %arg8[%c0_30, %c0_31] : memref<16x128xf32, #tpu.memory_space<vmem>>, vector<16x128xf32>
      tpu.vector_store %arg8[%c0_30, %c0_31], %58 {strides = array<i32>} : memref<16x128xf32, #tpu.memory_space<vmem>>, vector<16x128xf32>,
    } else {
    }
    %c0 = arith.constant 0 : index
    %c0_1 = arith.constant 0 : index
    %3 = vector.load %arg2[%c0, %c0_1] : memref<16x128xf32, #tpu.memory_space<vmem>>, vector<16x128xf32>
    %4 = arith.truncf %3 : vector<16x128xf32> to vector<16x128xbf16>
    %c0_2 = arith.constant 0 : index
    %c0_3 = arith.constant 0 : index
    %5 = vector.load %arg3[%c0_2, %c0_3] : memref<128x128xbf16, #tpu.memory_space<vmem>>, vector<128x128xbf16>
    %cst = arith.constant dense<0.000000e+00> : vector<16x128xf32>
    %6 = tpu.matmul %4, %5, %cst {dimension_numbers = #tpu.dot_dimension_numbers<[1], [0], [0], [1], [0, 0, 1, 1], [], []>} : vector<16x128xbf16>, vector<128x128xbf16>, vector<16x128xf32> -> vector<16x128xf32>
    %c0_4 = arith.constant 0 : index
    %c0_5 = arith.constant 0 : index
    %7 = vector.load %arg4[%c0_4, %c0_5] : memref<1x128xf32, #tpu.memory_space<vmem>>, vector<1x128xf32>
    %8 = vector.broadcast %7 : vector<1x128xf32> to vector<16x128xf32>
    %9 = arith.addf %6, %8 : vector<16x128xf32>
    %cst_6 = arith.constant 5.000000e-01 : f32
    %10 = vector.broadcast %cst_6 : f32 to vector<16x128xf32>
    %11 = arith.mulf %10, %9 : vector<16x128xf32>
    %cst_7 = arith.constant 0.707106769 : f32
    %12 = vector.broadcast %cst_7 : f32 to vector<16x128xf32>
    %13 = arith.mulf %9, %12 : vector<16x128xf32>
    %14 = math.absf %13 : vector<16x128xf32>
    %cst_8 = arith.constant 0.327591091 : f32
    %15 = vector.broadcast %cst_8 : f32 to vector<16x128xf32>
    %16 = arith.mulf %15, %14 : vector<16x128xf32>
    %cst_9 = arith.constant 1.000000e+00 : f32
    %17 = vector.broadcast %cst_9 : f32 to vector<16x128xf32>
    %18 = arith.addf %17, %16 : vector<16x128xf32>
    %19 = tpu.reciprocal %18 {approx = true} : vector<16x128xf32> -> vector<16x128xf32>
    %cst_10 = arith.constant 1.06140542 : f32
    %20 = vector.broadcast %cst_10 : f32 to vector<16x128xf32>
    %21 = arith.mulf %20, %19 : vector<16x128xf32>
    %cst_11 = arith.constant -1.45315206 : f32
    %22 = vector.broadcast %cst_11 : f32 to vector<16x128xf32>
    %23 = arith.addf %21, %22 : vector<16x128xf32>
    %24 = arith.mulf %23, %19 : vector<16x128xf32>
    %cst_12 = arith.constant 1.42141378 : f32
    %25 = vector.broadcast %cst_12 : f32 to vector<16x128xf32>
    %26 = arith.addf %24, %25 : vector<16x128xf32>
    %27 = arith.mulf %26, %19 : vector<16x128xf32>
    %cst_13 = arith.constant -0.284496725 : f32
    %28 = vector.broadcast %cst_13 : f32 to vector<16x128xf32>
    %29 = arith.addf %27, %28 : vector<16x128xf32>
    %30 = arith.mulf %29, %19 : vector<16x128xf32>
    %cst_14 = arith.constant 0.254829586 : f32
    %31 = vector.broadcast %cst_14 : f32 to vector<16x128xf32>
    %32 = arith.addf %30, %31 : vector<16x128xf32>
    %33 = arith.mulf %32, %19 : vector<16x128xf32>
    %cst_15 = arith.constant 0.000000e+00 : f32
    %34 = vector.broadcast %cst_15 : f32 to vector<16x128xf32>
    %35 = arith.subf %34, %14 : vector<16x128xf32>
    %36 = arith.mulf %35, %14 : vector<16x128xf32>
    %37 = math.exp %36 : vector<16x128xf32>
    %38 = arith.mulf %33, %37 : vector<16x128xf32>
    %cst_16 = arith.constant 1.000000e+00 : f32
    %39 = vector.broadcast %cst_16 : f32 to vector<16x128xf32>
    %40 = arith.subf %39, %38 : vector<16x128xf32>
    %cst_17 = arith.constant 0.000000e+00 : f32
    %41 = vector.broadcast %cst_17 : f32 to vector<16x128xf32>
    %42 = arith.cmpf oge, %13, %41 : vector<16x128xf32>
    %cst_18 = arith.constant 0.000000e+00 : f32
    %43 = vector.broadcast %cst_18 : f32 to vector<16x128xf32>
    %44 = arith.subf %43, %40 : vector<16x128xf32>
    %45 = arith.select %42, %40, %44 : vector<16x128xi1>, vector<16x128xf32>
    %cst_19 = arith.constant 1.000000e+00 : f32
    %46 = vector.broadcast %cst_19 : f32 to vector<16x128xf32>
    %47 = arith.addf %46, %45 : vector<16x128xf32>
    %48 = arith.mulf %11, %47 : vector<16x128xf32>
    %c0_20 = arith.constant 0 : index
    %c0_21 = arith.constant 0 : index
    %49 = vector.load %arg8[%c0_20, %c0_21] : memref<16x128xf32, #tpu.memory_space<vmem>>, vector<16x128xf32>
    %50 = arith.truncf %48 : vector<16x128xf32> to vector<16x128xbf16>
    %c0_22 = arith.constant 0 : index
    %c0_23 = arith.constant 0 : index
    %51 = vector.load %arg5[%c0_22, %c0_23] : memref<128x128xbf16, #tpu.memory_space<vmem>>, vector<128x128xbf16>
    %cst_24 = arith.constant dense<0.000000e+00> : vector<16x128xf32>
    %52 = tpu.matmul %50, %51, %cst_24 {dimension_numbers = #tpu.dot_dimension_numbers<[1], [0], [0], [1], [0, 0, 1, 1], [], []>} : vector<16x128xbf16>, vector<128x128xbf16>, vector<16x128xf32> -> vector<16x128xf32>
    %53 = arith.addf %49, %52 : vector<16x128xf32>
    %c0_25 = arith.constant 0 : index
    %c0_26 = arith.constant 0 : index
    %54 = vector.load %arg8[%c0_25, %c0_26] : memref<16x128xf32, #tpu.memory_space<vmem>>, vector<16x128xf32>
    tpu.vector_store %arg8[%c0_25, %c0_26], %53 {strides = array<i32>} : memref<16x128xf32, #tpu.memory_space<vmem>>, vector<16x128xf32>,
    %c0_i32_27 = arith.constant 0 : i32
    %55 = arith.cmpi eq, %arg1, %c0_i32_27 : i32
    %56 = arith.extui %55 : i1 to i32
    %c0_i32_28 = arith.constant 0 : i32
    %57 = arith.cmpi ne, %56, %c0_i32_28 : i32
    scf.if %57 {
      %c0_29 = arith.constant 0 : index
      %c0_30 = arith.constant 0 : index
      %58 = vector.load %arg8[%c0_29, %c0_30] : memref<16x128xf32, #tpu.memory_space<vmem>>, vector<16x128xf32>
      %c0_31 = arith.constant 0 : index
      %c0_32 = arith.constant 0 : index
      %59 = vector.load %arg6[%c0_31, %c0_32] : memref<1x128xf32, #tpu.memory_space<vmem>>, vector<1x128xf32>
      %60 = vector.broadcast %59 : vector<1x128xf32> to vector<16x128xf32>
      %61 = arith.addf %58, %60 : vector<16x128xf32>
      %c0_33 = arith.constant 0 : index
      %c0_34 = arith.constant 0 : index
      %62 = vector.load %arg7[%c0_33, %c0_34] : memref<16x128xf32, #tpu.memory_space<vmem>>, vector<16x128xf32>
      tpu.vector_store %arg7[%c0_33, %c0_34], %61 {strides = array<i32>} : memref<16x128xf32, #tpu.memory_space<vmem>>, vector<16x128xf32>,
    } else {
    }
    return
  }
  func.func @transform_0(%arg0: i32, %arg1: i32) -> (i32, i32) {
    %c0_i32 = arith.constant 0 : i32
    %c0_i32_0 = arith.constant 0 : i32
    return %arg0, %c0_i32 : i32, i32
  }
  func.func @transform_1(%arg0: i32, %arg1: i32) -> (i32, i32) {
    %c0_i32 = arith.constant 0 : i32
    %c0_i32_0 = arith.constant 0 : i32
    return %c0_i32, %arg1 : i32, i32
  }
  func.func @transform_2(%arg0: i32, %arg1: i32) -> (i32, i32) {
    %c0_i32 = arith.constant 0 : i32
    %c0_i32_0 = arith.constant 0 : i32
    return %c0_i32, %arg1 : i32, i32
  }
  func.func @transform_3(%arg0: i32, %arg1: i32) -> (i32, i32) {
    %c0_i32 = arith.constant 0 : i32
    %c0_i32_0 = arith.constant 0 : i32
    return %arg1, %c0_i32 : i32, i32
  }
  func.func @transform_4(%arg0: i32, %arg1: i32) -> (i32, i32) {
    %c0_i32 = arith.constant 0 : i32
    %c0_i32_0 = arith.constant 0 : i32
    %c0_i32_1 = arith.constant 0 : i32
    return %c0_i32, %c0_i32_0 : i32, i32
  }
  func.func @transform_5(%arg0: i32, %arg1: i32) -> (i32, i32) {
    %c0_i32 = arith.constant 0 : i32
    %c0_i32_0 = arith.constant 0 : i32
    return %arg0, %c0_i32 : i32, i32
  }
}

module attributes {stable_mosaic.version = 11 : i64} {
  func.func @ffn_kernel(%arg0: i32, %arg1: i32, %arg2: memref<16x128xf32, #tpu.memory_space<vmem>>, %arg3: memref<128x128xbf16, #tpu.memory_space<vmem>>, %arg4: memref<1x128xf32, #tpu.memory_space<vmem>>, %arg5: memref<128x128xbf16, #tpu.memory_space<vmem>>, %arg6: memref<1x128xf32, #tpu.memory_space<vmem>>, %arg7: memref<16x128xf32, #tpu.memory_space<vmem>>, %arg8: memref<16x128xf32, #tpu.memory_space<vmem>>) attributes {dimension_semantics = [#tpu.dimension_semantics<parallel>, #tpu.dimension_semantics<arbitrary>], iteration_bounds = array<i64: 1, 1>, scalar_prefetch = 0 : i64, scratch_operands = 1 : i64, tpu.core_type = #tpu.core_type<tc>, window_params = [{transform_indices = @transform_0, window_bounds = array<i64: 16, 128>}, {transform_indices = @transform_1, window_bounds = array<i64: 128, 128>}, {transform_indices = @transform_2, window_bounds = array<i64: 1, 128>}, {transform_indices = @transform_3, window_bounds = array<i64: 128, 128>}, {pipeline_mode = #tpu.pipeline_mode<synchronous>, transform_indices = @transform_4, window_bounds = array<i64: 1, 128>}, {transform_indices = @transform_5, window_bounds = array<i64: 16, 128>}]} {
    %c0_i32 = arith.constant 0 : i32
    %0 = arith.cmpi eq, %arg1, %c0_i32 : i32
    %1 = arith.extui %0 : i1 to i32
    %c0_i32_0 = arith.constant 0 : i32
    %2 = arith.cmpi ne, %1, %c0_i32_0 : i32
    scf.if %2 {
      %cst_29 = arith.constant 0.000000e+00 : f32
      %58 = vector.broadcast %cst_29 : f32 to vector<16x128xf32>
      %c0_30 = arith.constant 0 : index
      %c0_31 = arith.constant 0 : index
      %59 = vector.load %arg8[%c0_30, %c0_31] : memref<16x128xf32, #tpu.memory_space<vmem>>, vector<16x128xf32>
      tpu.vector_store %arg8[%c0_30, %c0_31], %58 {strides = array<i32>} : memref<16x128xf32, #tpu.memory_space<vmem>>, vector<16x128xf32>,
    } else {
    }
    %c0 = arith.constant 0 : index
    %c0_1 = arith.constant 0 : index
    %3 = vector.load %arg2[%c0, %c0_1] : memref<16x128xf32, #tpu.memory_space<vmem>>, vector<16x128xf32>
    %4 = arith.truncf %3 : vector<16x128xf32> to vector<16x128xbf16>
    %c0_2 = arith.constant 0 : index
    %c0_3 = arith.constant 0 : index
    %5 = vector.load %arg3[%c0_2, %c0_3] : memref<128x128xbf16, #tpu.memory_space<vmem>>, vector<128x128xbf16>
    %cst = arith.constant dense<0.000000e+00> : vector<16x128xf32>
    %6 = tpu.matmul %4, %5, %cst {dimension_numbers = #tpu.dot_dimension_numbers<[1], [0], [0], [1], [0, 0, 1, 1], [], []>} : vector<16x128xbf16>, vector<128x128xbf16>, vector<16x128xf32> -> vector<16x128xf32>
    %c0_4 = arith.constant 0 : index
    %c0_5 = arith.constant 0 : index
    %7 = vector.load %arg4[%c0_4, %c0_5] : memref<1x128xf32, #tpu.memory_space<vmem>>, vector<1x128xf32>
    %8 = vector.broadcast %7 : vector<1x128xf32> to vector<16x128xf32>
    %9 = arith.addf %6, %8 : vector<16x128xf32>
    %cst_6 = arith.constant 5.000000e-01 : f32
    %10 = vector.broadcast %cst_6 : f32 to vector<16x128xf32>
    %11 = arith.mulf %10, %9 : vector<16x128xf32>
    %cst_7 = arith.constant 0.707106769 : f32
    %12 = vector.broadcast %cst_7 : f32 to vector<16x128xf32>
    %13 = arith.mulf %9, %12 : vector<16x128xf32>
    %14 = math.absf %13 : vector<16x128xf32>
    %cst_8 = arith.constant 0.327591091 : f32
    %15 = vector.broadcast %cst_8 : f32 to vector<16x128xf32>
    %16 = arith.mulf %15, %14 : vector<16x128xf32>
    %cst_9 = arith.constant 1.000000e+00 : f32
    %17 = vector.broadcast %cst_9 : f32 to vector<16x128xf32>
    %18 = arith.addf %17, %16 : vector<16x128xf32>
    %19 = tpu.reciprocal %18 {approx = true} : vector<16x128xf32> -> vector<16x128xf32>
    %cst_10 = arith.constant 1.06140542 : f32
    %20 = vector.broadcast %cst_10 : f32 to vector<16x128xf32>
    %21 = arith.mulf %20, %19 : vector<16x128xf32>
    %cst_11 = arith.constant -1.45315206 : f32
    %22 = vector.broadcast %cst_11 : f32 to vector<16x128xf32>
    %23 = arith.addf %21, %22 : vector<16x128xf32>
    %24 = arith.mulf %23, %19 : vector<16x128xf32>
    %cst_12 = arith.constant 1.42141378 : f32
    %25 = vector.broadcast %cst_12 : f32 to vector<16x128xf32>
    %26 = arith.addf %24, %25 : vector<16x128xf32>
    %27 = arith.mulf %26, %19 : vector<16x128xf32>
    %cst_13 = arith.constant -0.284496725 : f32
    %28 = vector.broadcast %cst_13 : f32 to vector<16x128xf32>
    %29 = arith.addf %27, %28 : vector<16x128xf32>
    %30 = arith.mulf %29, %19 : vector<16x128xf32>
    %cst_14 = arith.constant 0.254829586 : f32
    %31 = vector.broadcast %cst_14 : f32 to vector<16x128xf32>
    %32 = arith.addf %30, %31 : vector<16x128xf32>
    %33 = arith.mulf %32, %19 : vector<16x128xf32>
    %cst_15 = arith.constant 0.000000e+00 : f32
    %34 = vector.broadcast %cst_15 : f32 to vector<16x128xf32>
    %35 = arith.subf %34, %14 : vector<16x128xf32>
    %36 = arith.mulf %35, %14 : vector<16x128xf32>
    %37 = math.exp %36 : vector<16x128xf32>
    %38 = arith.mulf %33, %37 : vector<16x128xf32>
    %cst_16 = arith.constant 1.000000e+00 : f32
    %39 = vector.broadcast %cst_16 : f32 to vector<16x128xf32>
    %40 = arith.subf %39, %38 : vector<16x128xf32>
    %cst_17 = arith.constant 0.000000e+00 : f32
    %41 = vector.broadcast %cst_17 : f32 to vector<16x128xf32>
    %42 = arith.cmpf oge, %13, %41 : vector<16x128xf32>
    %cst_18 = arith.constant 0.000000e+00 : f32
    %43 = vector.broadcast %cst_18 : f32 to vector<16x128xf32>
    %44 = arith.subf %43, %40 : vector<16x128xf32>
    %45 = arith.select %42, %40, %44 : vector<16x128xi1>, vector<16x128xf32>
    %cst_19 = arith.constant 1.000000e+00 : f32
    %46 = vector.broadcast %cst_19 : f32 to vector<16x128xf32>
    %47 = arith.addf %46, %45 : vector<16x128xf32>
    %48 = arith.mulf %11, %47 : vector<16x128xf32>
    %c0_20 = arith.constant 0 : index
    %c0_21 = arith.constant 0 : index
    %49 = vector.load %arg8[%c0_20, %c0_21] : memref<16x128xf32, #tpu.memory_space<vmem>>, vector<16x128xf32>
    %50 = arith.truncf %48 : vector<16x128xf32> to vector<16x128xbf16>
    %c0_22 = arith.constant 0 : index
    %c0_23 = arith.constant 0 : index
    %51 = vector.load %arg5[%c0_22, %c0_23] : memref<128x128xbf16, #tpu.memory_space<vmem>>, vector<128x128xbf16>
    %cst_24 = arith.constant dense<0.000000e+00> : vector<16x128xf32>
    %52 = tpu.matmul %50, %51, %cst_24 {dimension_numbers = #tpu.dot_dimension_numbers<[1], [0], [0], [1], [0, 0, 1, 1], [], []>} : vector<16x128xbf16>, vector<128x128xbf16>, vector<16x128xf32> -> vector<16x128xf32>
    %53 = arith.addf %49, %52 : vector<16x128xf32>
    %c0_25 = arith.constant 0 : index
    %c0_26 = arith.constant 0 : index
    %54 = vector.load %arg8[%c0_25, %c0_26] : memref<16x128xf32, #tpu.memory_space<vmem>>, vector<16x128xf32>
    tpu.vector_store %arg8[%c0_25, %c0_26], %53 {strides = array<i32>} : memref<16x128xf32, #tpu.memory_space<vmem>>, vector<16x128xf32>,
    %c0_i32_27 = arith.constant 0 : i32
    %55 = arith.cmpi eq, %arg1, %c0_i32_27 : i32
    %56 = arith.extui %55 : i1 to i32
    %c0_i32_28 = arith.constant 0 : i32
    %57 = arith.cmpi ne, %56, %c0_i32_28 : i32
    scf.if %57 {
      %c0_29 = arith.constant 0 : index
      %c0_30 = arith.constant 0 : index
      %58 = vector.load %arg8[%c0_29, %c0_30] : memref<16x128xf32, #tpu.memory_space<vmem>>, vector<16x128xf32>
      %c0_31 = arith.constant 0 : index
      %c0_32 = arith.constant 0 : index
      %59 = vector.load %arg6[%c0_31, %c0_32] : memref<1x128xf32, #tpu.memory_space<vmem>>, vector<1x128xf32>
      %60 = vector.broadcast %59 : vector<1x128xf32> to vector<16x128xf32>
      %61 = arith.addf %58, %60 : vector<16x128xf32>
      %c0_33 = arith.constant 0 : index
      %c0_34 = arith.constant 0 : index
      %62 = vector.load %arg7[%c0_33, %c0_34] : memref<16x128xf32, #tpu.memory_space<vmem>>, vector<16x128xf32>
      tpu.vector_store %arg7[%c0_33, %c0_34], %61 {strides = array<i32>} : memref<16x128xf32, #tpu.memory_space<vmem>>, vector<16x128xf32>,
    } else {
    }
    return
  }
  func.func @transform_0(%arg0: i32, %arg1: i32) -> (i32, i32) {
    %c0_i32 = arith.constant 0 : i32
    %c0_i32_0 = arith.constant 0 : i32
    return %arg0, %c0_i32 : i32, i32
  }
  func.func @transform_1(%arg0: i32, %arg1: i32) -> (i32, i32) {
    %c0_i32 = arith.constant 0 : i32
    %c0_i32_0 = arith.constant 0 : i32
    return %c0_i32, %arg1 : i32, i32
  }
  func.func @transform_2(%arg0: i32, %arg1: i32) -> (i32, i32) {
    %c0_i32 = arith.constant 0 : i32
    %c0_i32_0 = arith.constant 0 : i32
    return %c0_i32, %arg1 : i32, i32
  }
  func.func @transform_3(%arg0: i32, %arg1: i32) -> (i32, i32) {
    %c0_i32 = arith.constant 0 : i32
    %c0_i32_0 = arith.constant 0 : i32
    return %arg1, %c0_i32 : i32, i32
  }
  func.func @transform_4(%arg0: i32, %arg1: i32) -> (i32, i32) {
    %c0_i32 = arith.constant 0 : i32
    %c0_i32_0 = arith.constant 0 : i32
    %c0_i32_1 = arith.constant 0 : i32
    return %c0_i32, %c0_i32_0 : i32, i32
  }
  func.func @transform_5(%arg0: i32, %arg1: i32) -> (i32, i32) {
    %c0_i32 = arith.constant 0 : i32
    %c0_i32_0 = arith.constant 0 : i32
    return %arg0, %c0_i32 : i32, i32
  }
}

</mosaic_0001>

<llo_original>
// kernel: tpu_custom_call.1
$region0: #{tpu_custom_call.1}
  #allocation0 [shape = 'u32[]', space=smem, size = 0x4, offset = 0x4, fixed_abs, tag = 'smem constant byte address 0x4 - core index']
  #allocation1 [shape = 'u32[144,128]{1,0:T(1,128)}', space=vmem, size = 0x12000, scoped, tag = 'internal scratch']
  #allocation2 [shape = 'f32[16,128]{1,0:T(8,128)}', space=vmem, size = 0x2000, scoped, tag = 'scratch operand']
  %s0 = inlined_call_operand.hbm [shape: f32[16,128], index: 0, kind: input, shape index: {}]
  %s1 = inlined_call_operand.hbm [shape: bf16[128,128], index: 1, kind: input, shape index: {}]
  %s2 = inlined_call_operand.vmem [shape: f32[1,128], index: 2, kind: input, shape index: {}]
  %s3 = inlined_call_operand.hbm [shape: bf16[128,128], index: 3, kind: input, shape index: {}]
  %s4 = inlined_call_operand.vmem [shape: f32[1,128], index: 4, kind: input, shape index: {}]
  %s5 = inlined_call_operand.hbm [shape: f32[16,128], index: 5, kind: output, shape index: {}]
  %s6 = sld [smem:[#allocation0]]
  $region50: #{tpu_custom_call.1} parent=0
    _
  %s8 = ssub.s32 1, %s6
  %s9 = scalar_select 0, %s8, %s6
  $region1: #{tpu_custom_call.1} parent=0
    #allocation3 [shape = 'u8[8192]{0}', space=vmem, size = 0x2000, scoped, tag = 'input window, operand 0, single buffered']
    #allocation4 [shape = 's32[1]{0}', space=sflag, size = 0x4, scoped, tag = 'scoped memory for tpu_custom_call.1']
    #allocation5 [shape = 's32[1]{0}', space=sflag, size = 0x4, scoped, tag = 'scoped memory for tpu_custom_call.1']
    #allocation6 [shape = 'u8[32768]{0}', space=vmem, size = 0x8000, scoped, tag = 'input window, operand 1, single buffered']
    #allocation7 [shape = 's32[1]{0}', space=sflag, size = 0x4, scoped, tag = 'scoped memory for tpu_custom_call.1']
    #allocation8 [shape = 'u8[32768]{0}', space=vmem, size = 0x8000, scoped, tag = 'input window, operand 3, single buffered']
    #allocation9 [shape = 'u8[8192]{0}', space=vmem, size = 0x2000, scoped, tag = 'output window, operand 0, single buffered']
    %10 = vsyncpa [#allocation4], 0
    %11 = vsyncpa [#allocation7], 0
    %12 = vsyncpa [#allocation5], 0
    // Predicated region
    $region2: #{tpu_custom_call.1} parent=1 // pred_check
      _
    $region3: #{tpu_custom_call.1} parent=1 // pred_check_branch
      %14 = sbr.rel (0) target = $region5
    $region4: #{tpu_custom_call.1} parent=1 // pred_region
      %s16 = ssub.s32 256, 256
      %17 = vsyncadd [#allocation4], %s16
      %s18 = sshll.u32 [#allocation3], 4
      %s19 = int_to_ptr.vmem [resolvable:$true] %s18
      %24 = dma.hbm_to_vmem [thread:$0]  %s0, 256, %s19, [#allocation4], 128, 128, 8
    $region5: #{tpu_custom_call.1} parent=1 // pred_fallthru
      _
    // Predicated region
    $region6: #{tpu_custom_call.1} parent=1 // pred_check
      _
    $region7: #{tpu_custom_call.1} parent=1 // pred_check_branch
      %26 = sbr.rel (0) target = $region9
    $region8: #{tpu_custom_call.1} parent=1 // pred_region
      %s28 = ssub.s32 1024, 1024
      %29 = vsyncadd [#allocation7], %s28
      %s30 = sshll.u32 [#allocation6], 4
      %s31 = int_to_ptr.vmem [resolvable:$true] %s30
      %36 = dma.hbm_to_vmem [thread:$0]  %s1, 1024, %s31, [#allocation7], 64, 64, 4
    $region9: #{tpu_custom_call.1} parent=1 // pred_fallthru
      _
    // Predicated region
    $region10: #{tpu_custom_call.1} parent=1 // pred_check
      _
    $region11: #{tpu_custom_call.1} parent=1 // pred_check_branch
      %38 = sbr.rel (0) target = $region13
    $region12: #{tpu_custom_call.1} parent=1 // pred_region
      _
    $region13: #{tpu_custom_call.1} parent=1 // pred_fallthru
      _
    // Predicated region
    $region14: #{tpu_custom_call.1} parent=1 // pred_check
      _
    $region15: #{tpu_custom_call.1} parent=1 // pred_check_branch
      %40 = sbr.rel (0) target = $region17
    $region16: #{tpu_custom_call.1} parent=1 // pred_region
      %s42 = ssub.s32 1024, 1024
      %43 = vsyncadd [#allocation7], %s42
      %s44 = sshll.u32 [#allocation8], 4
      %s45 = int_to_ptr.vmem [resolvable:$true] %s44
      %50 = dma.hbm_to_vmem [thread:$0]  %s3, 1024, %s45, [#allocation7], 64, 64, 4
    $region17: #{tpu_custom_call.1} parent=1 // pred_fallthru
      _
    // Predicated region
    $region18: #{tpu_custom_call.1} parent=1 // pred_check
      _
    $region19: #{tpu_custom_call.1} parent=1 // pred_check_branch
      %52 = sbr.rel (0) target = $region21
    $region20: #{tpu_custom_call.1} parent=1 // pred_region
      _
    $region21: #{tpu_custom_call.1} parent=1 // pred_fallthru
      _
    // Predicated region
    $region22: #{tpu_custom_call.1} parent=1 // pred_check
      _
    $region23: #{tpu_custom_call.1} parent=1 // pred_check_branch
      %54 = sbr.rel (0) target = $region25
    $region24: #{tpu_custom_call.1} parent=1 // pred_region
      %55 = dma.done [#allocation4], 256
    $region25: #{tpu_custom_call.1} parent=1 // pred_fallthru
      _
    // Predicated region
    $region26: #{tpu_custom_call.1} parent=1 // pred_check
      _
    $region27: #{tpu_custom_call.1} parent=1 // pred_check_branch
      %57 = sbr.rel (0) target = $region29
    $region28: #{tpu_custom_call.1} parent=1 // pred_region
      %58 = dma.done [#allocation7], 1024
    $region29: #{tpu_custom_call.1} parent=1 // pred_fallthru
      _
    // Predicated region
    $region30: #{tpu_custom_call.1} parent=1 // pred_check
      _
    $region31: #{tpu_custom_call.1} parent=1 // pred_check_branch
      %60 = sbr.rel (0) target = $region33
    $region32: #{tpu_custom_call.1} parent=1 // pred_region
      %61 = dma.done [#allocation7], 1024
    $region33: #{tpu_custom_call.1} parent=1 // pred_fallthru
      _
    %p63 = scmp.eq.s32.totalorder 0, 0
    // Predicated region
    $region34: #{tpu_custom_call.1} parent=1 // pred_check
      %p64 = pneg %p63
    $region35: #{tpu_custom_call.1} parent=1 // pred_check_branch
      %66 = sbr.rel (%p64) target = $region37
    $region36: #{tpu_custom_call.1} parent=1 // pred_region
      %67 = vst [vmem:[#allocation2] sm:$0xff] 0.0
      %68 = vst [vmem:[#allocation2 + $0x8] sm:$0xff] 0.0
    $region37: #{tpu_custom_call.1} parent=1 // pred_fallthru
      _
    %v69 = vld [vmem:[#allocation3] sm:$0xff]
    %v70 = vld [vmem:[#allocation3 + $0x8] sm:$0xff]
    %v71 = vpack.c.bf16 %v70, %v69
    %v72 = vld [vmem:[#allocation6] sm:$0xf]
    %v73 = vld [vmem:[#allocation6 + $0x4] sm:$0xf]
    %v74 = vld [vmem:[#allocation6 + $0x8] sm:$0xf]
    %v75 = vld [vmem:[#allocation6 + $0xc] sm:$0xf]
    %v76 = vld [vmem:[#allocation6 + $0x10] sm:$0xf]
    %v77 = vld [vmem:[#allocation6 + $0x14] sm:$0xf]
    %v78 = vld [vmem:[#allocation6 + $0x18] sm:$0xf]
    %v79 = vld [vmem:[#allocation6 + $0x1c] sm:$0xf]
    %v80 = vld [vmem:[#allocation6 + $0x20] sm:$0xf]
    %v81 = vld [vmem:[#allocation6 + $0x24] sm:$0xf]
    %v82 = vld [vmem:[#allocation6 + $0x28] sm:$0xf]
    %v83 = vld [vmem:[#allocation6 + $0x2c] sm:$0xf]
    %v84 = vld [vmem:[#allocation6 + $0x30] sm:$0xf]
    %v85 = vld [vmem:[#allocation6 + $0x34] sm:$0xf]
    %v86 = vld [vmem:[#allocation6 + $0x38] sm:$0xf]
    %v87 = vld [vmem:[#allocation6 + $0x3c] sm:$0xf]
    %v88 = vld [vmem:[%s2] sm:$0x1]
    %v90 = vlaneseq
    %v91 = vshrl.u32 %v90, 7
    %v92 = vsub.s32 0, %v91
    %v93 = vrot.slane %v88, %v92
    %v111 = vunpack.c.l.b16 %v72
    %v112 = vunpack.c.l.b16 %v73
    %v113 = vunpack.c.l.b16 %v74
    %v114 = vunpack.c.l.b16 %v75
    %v115 = vunpack.c.l.b16 %v76
    %v116 = vunpack.c.l.b16 %v77
    %v117 = vunpack.c.l.b16 %v78
    %v118 = vunpack.c.l.b16 %v79
    %v119 = vunpack.c.l.b16 %v80
    %v120 = vunpack.c.l.b16 %v81
    %v121 = vunpack.c.l.b16 %v82
    %v122 = vunpack.c.l.b16 %v83
    %v123 = vunpack.c.l.b16 %v84
    %v124 = vunpack.c.l.b16 %v85
    %v125 = vunpack.c.l.b16 %v86
    %v126 = vunpack.c.l.b16 %v87
    %v127 = vpack.c.b16 %v112, %v111
    %v128 = vpack.c.b16 %v114, %v113
    %v129 = vpack.c.b16 %v116, %v115
    %v130 = vpack.c.b16 %v118, %v117
    %v131 = vpack.c.b16 %v120, %v119
    %v132 = vpack.c.b16 %v122, %v121
    %v133 = vpack.c.b16 %v124, %v123
    %v134 = vpack.c.b16 %v126, %v125
    %143 = vmatprep.subr.bf16.mxu0 0
    %144 = vmatpush1.bf16.msra.mxu0 %v134
    %145 = vmatprep.subr.bf16.mxu0 0
    %146 = vmatpush1.bf16.msra.mxu0 %v133
    %147 = vmatprep.subr.bf16.mxu0 0
    %148 = vmatpush1.bf16.msra.mxu0 %v132
    %149 = vmatprep.subr.bf16.mxu0 0
    %150 = vmatpush1.bf16.msra.mxu0 %v131
    %151 = vmatprep.subr.bf16.mxu0 0
    %152 = vmatpush1.bf16.msra.mxu0 %v130
    %153 = vmatprep.subr.bf16.mxu0 0
    %154 = vmatpush1.bf16.msra.mxu0 %v129
    %155 = vmatprep.subr.bf16.mxu0 0
    %156 = vmatpush1.bf16.msra.mxu0 %v128
    %157 = vmatprep.subr.bf16.mxu0 0
    %158 = vmatpush1.bf16.msra.mxu0 %v127
    %159 = vmatprep.subr.bf16.mxu0 0
    %160 = vmatpush2.bf16.msra.mxu0 0
    %161 = vmatprep.subr.bf16.mxu0 0
    %162 = vmatpush2.bf16.msra.mxu0 0
    %163 = vmatprep.subr.bf16.mxu0 0
    %164 = vmatpush2.bf16.msra.mxu0 0
    %165 = vmatprep.subr.bf16.mxu0 0
    %166 = vmatpush2.bf16.msra.mxu0 0
    %167 = vmatprep.subr.bf16.mxu0 0
    %168 = vmatpush2.bf16.msra.mxu0 0
    %169 = vmatprep.subr.bf16.mxu0 0
    %170 = vmatpush2.bf16.msra.mxu0 0
    %171 = vmatprep.subr.bf16.mxu0 0
    %172 = vmatpush2.bf16.msra.mxu0 0
    %173 = vmatprep.subr.bf16.mxu0 0
    %174 = vmatpush2.bf16.msra.mxu0 0
    %175 = vmatprep.mubr.bf16.mxu0 0
    %176 = vmatmul.mubr.bf16.gmra.mxu0 %v71
    %v177 = vpop.f32.mrf.mxu0
    %v178 = vadd.f32 %v93, %v177
    %v179 = vpop.f32.mrf.mxu0
    %v180 = vpop.f32.mrf.mxu0
    %v181 = vadd.f32 %v93, %v180
    %v182 = vpop.f32.mrf.mxu0
    %183 = vdwg.mxu0
    %v184 = vmul.f32 %v178, 0.5
    %v185 = vmul.f32 %v181, 0.5
    %v186 = vmul.f32 %v178, 0.70710677
    %v187 = vmul.f32 %v181, 0.70710677
    %v188 = vand.u32 2147483647, %v186
    %v189 = vand.u32 2147483647, %v187
    %v190 = vmul.f32 %v188, 0.3275911
    %v191 = vmul.f32 %v189, 0.3275911
    %v192 = vadd.f32 %v190, 1.0
    %v193 = vadd.f32 %v191, 1.0
    %v194 = vrcp.pop %v192
    %v195 = vrcp.pop %v193
    %v196 = vmul.f32 %v194, 1.0614054
    %v197 = vmul.f32 %v195, 1.0614054
    %v198 = vadd.f32 %v196, -1.4531521
    %v199 = vadd.f32 %v197, -1.4531521
    %v200 = vmul.f32 %v198, %v194
    %v201 = vmul.f32 %v199, %v195
    %v202 = vadd.f32 %v200, 1.4214138
    %v203 = vadd.f32 %v201, 1.4214138
    %v204 = vmul.f32 %v202, %v194
    %v205 = vmul.f32 %v203, %v195
    %v206 = vadd.f32 %v204, -0.28449672
    %v207 = vadd.f32 %v205, -0.28449672
    %v208 = vmul.f32 %v206, %v194
    %v209 = vmul.f32 %v207, %v195
    %v210 = vadd.f32 %v208, 0.2548296
    %v211 = vadd.f32 %v209, 0.2548296
    %v212 = vmul.f32 %v210, %v194
    %v213 = vmul.f32 %v211, %v195
    %v214 = vsub.f32 0.0, %v188
    %v215 = vsub.f32 0.0, %v189
    %v216 = vmul.f32 %v214, %v188
    %v217 = vmul.f32 %v215, %v189
    %v218 = vmul.f32 %v216, 1.442695
    %v219 = vpow.pop %v218
    %v220 = vmul.f32 %v217, 1.442695
    %v221 = vpow.pop %v220
    %v222 = vmul.f32 %v212, %v219
    %v223 = vmul.f32 %v213, %v221
    %v224 = vsub.f32 1.0, %v222
    %v225 = vsub.f32 1.0, %v223
    %vm226 = vcmp.ge.f32.partialorder %v186, 0.0
    %vm227 = vcmp.ge.f32.partialorder %v187, 0.0
    %v228 = vsub.f32 0.0, %v224
    %v229 = vsub.f32 0.0, %v225
    %v230 = vsel %vm226, %v224, %v228
    %v231 = vsel %vm227, %v225, %v229
    %v232 = vadd.f32 %v230, 1.0
    %v233 = vadd.f32 %v231, 1.0
    %v234 = vmul.f32 %v184, %v232
    %v235 = vmul.f32 %v185, %v233
    %v236 = vld [vmem:[#allocation2] sm:$0xff]
    %v237 = vld [vmem:[#allocation2 + $0x8] sm:$0xff]
    %v238 = vpack.c.bf16 %v235, %v234
    %v239 = vld [vmem:[#allocation8] sm:$0xf]
    %v240 = vld [vmem:[#allocation8 + $0x4] sm:$0xf]
    %v241 = vld [vmem:[#allocation8 + $0x8] sm:$0xf]
    %v242 = vld [vmem:[#allocation8 + $0xc] sm:$0xf]
    %v243 = vld [vmem:[#allocation8 + $0x10] sm:$0xf]
    %v244 = vld [vmem:[#allocation8 + $0x14] sm:$0xf]
    %v245 = vld [vmem:[#allocation8 + $0x18] sm:$0xf]
    %v246 = vld [vmem:[#allocation8 + $0x1c] sm:$0xf]
    %v247 = vld [vmem:[#allocation8 + $0x20] sm:$0xf]
    %v248 = vld [vmem:[#allocation8 + $0x24] sm:$0xf]
    %v249 = vld [vmem:[#allocation8 + $0x28] sm:$0xf]
    %v250 = vld [vmem:[#allocation8 + $0x2c] sm:$0xf]
    %v251 = vld [vmem:[#allocation8 + $0x30] sm:$0xf]
    %v252 = vld [vmem:[#allocation8 + $0x34] sm:$0xf]
    %v253 = vld [vmem:[#allocation8 + $0x38] sm:$0xf]
    %v254 = vld [vmem:[#allocation8 + $0x3c] sm:$0xf]
    %v271 = vunpack.c.l.b16 %v239
    %v272 = vunpack.c.l.b16 %v240
    %v273 = vunpack.c.l.b16 %v241
    %v274 = vunpack.c.l.b16 %v242
    %v275 = vunpack.c.l.b16 %v243
    %v276 = vunpack.c.l.b16 %v244
    %v277 = vunpack.c.l.b16 %v245
    %v278 = vunpack.c.l.b16 %v246
    %v279 = vunpack.c.l.b16 %v247
    %v280 = vunpack.c.l.b16 %v248
    %v281 = vunpack.c.l.b16 %v249
    %v282 = vunpack.c.l.b16 %v250
    %v283 = vunpack.c.l.b16 %v251
    %v284 = vunpack.c.l.b16 %v252
    %v285 = vunpack.c.l.b16 %v253
    %v286 = vunpack.c.l.b16 %v254
    %v287 = vpack.c.b16 %v272, %v271
    %v288 = vpack.c.b16 %v274, %v273
    %v289 = vpack.c.b16 %v276, %v275
    %v290 = vpack.c.b16 %v278, %v277
    %v291 = vpack.c.b16 %v280, %v279
    %v292 = vpack.c.b16 %v282, %v281
    %v293 = vpack.c.b16 %v284, %v283
    %v294 = vpack.c.b16 %v286, %v285
    %303 = vmatprep.subr.bf16.mxu0 0
    %304 = vmatpush1.bf16.msra.mxu0 %v294
    %305 = vmatprep.subr.bf16.mxu0 0
    %306 = vmatpush1.bf16.msra.mxu0 %v293
    %307 = vmatprep.subr.bf16.mxu0 0
    %308 = vmatpush1.bf16.msra.mxu0 %v292
    %309 = vmatprep.subr.bf16.mxu0 0
    %310 = vmatpush1.bf16.msra.mxu0 %v291
    %311 = vmatprep.subr.bf16.mxu0 0
    %312 = vmatpush1.bf16.msra.mxu0 %v290
    %313 = vmatprep.subr.bf16.mxu0 0
    %314 = vmatpush1.bf16.msra.mxu0 %v289
    %315 = vmatprep.subr.bf16.mxu0 0
    %316 = vmatpush1.bf16.msra.mxu0 %v288
    %317 = vmatprep.subr.bf16.mxu0 0
    %318 = vmatpush1.bf16.msra.mxu0 %v287
    %319 = vmatprep.subr.bf16.mxu0 0
    %320 = vmatpush2.bf16.msra.mxu0 0
    %321 = vmatprep.subr.bf16.mxu0 0
    %322 = vmatpush2.bf16.msra.mxu0 0
    %323 = vmatprep.subr.bf16.mxu0 0
    %324 = vmatpush2.bf16.msra.mxu0 0
    %325 = vmatprep.subr.bf16.mxu0 0
    %326 = vmatpush2.bf16.msra.mxu0 0
    %327 = vmatprep.subr.bf16.mxu0 0
    %328 = vmatpush2.bf16.msra.mxu0 0
    %329 = vmatprep.subr.bf16.mxu0 0
    %330 = vmatpush2.bf16.msra.mxu0 0
    %331 = vmatprep.subr.bf16.mxu0 0
    %332 = vmatpush2.bf16.msra.mxu0 0
    %333 = vmatprep.subr.bf16.mxu0 0
    %334 = vmatpush2.bf16.msra.mxu0 0
    %335 = vmatprep.mubr.bf16.mxu0 0
    %336 = vmatmul.mubr.bf16.gmra.mxu0 %v238
    %v337 = vpop.f32.mrf.mxu0
    %v338 = vadd.f32 0.0, %v337
    %v339 = vpop.f32.mrf.mxu0
    %v340 = vpop.f32.mrf.mxu0
    %v341 = vadd.f32 0.0, %v340
    %v342 = vpop.f32.mrf.mxu0
    %343 = vdwg.mxu0
    %v344 = vadd.f32 %v236, %v338
    %v345 = vadd.f32 %v237, %v341
    %346 = vst [vmem:[#allocation2] sm:$0xff] %v344
    %347 = vst [vmem:[#allocation2 + $0x8] sm:$0xff] %v345
    // Predicated region
    $region38: #{tpu_custom_call.1} parent=1 // pred_check
      %p348 = pneg %p63
    $region39: #{tpu_custom_call.1} parent=1 // pred_check_branch
      %350 = sbr.rel (%p348) target = $region41
    $region40: #{tpu_custom_call.1} parent=1 // pred_region
      %v351 = vld [vmem:[#allocation2] sm:$0xff]
      %v352 = vld [vmem:[#allocation2 + $0x8] sm:$0xff]
      %v353 = vld [vmem:[%s4] sm:$0x1]
      %v355 = vlaneseq
      %v356 = vshrl.u32 %v355, 7
      %v357 = vsub.s32 0, %v356
      %v358 = vrot.slane %v353, %v357
      %v360 = vadd.f32 %v351, %v358
      %v361 = vadd.f32 %v352, %v358
      %362 = vst [vmem:[#allocation9] sm:$0xff] %v360
      %363 = vst [vmem:[#allocation9 + $0x8] sm:$0xff] %v361
    $region41: #{tpu_custom_call.1} parent=1 // pred_fallthru
      _
    // Predicated region
    $region42: #{tpu_custom_call.1} parent=1 // pred_check
      _
    $region43: #{tpu_custom_call.1} parent=1 // pred_check_branch
      %365 = sbr.rel (0) target = $region45
    $region44: #{tpu_custom_call.1} parent=1 // pred_region
      %s367 = ssub.s32 256, 256
      %368 = vsyncadd [#allocation5], %s367
      %s369 = sshll.u32 [#allocation9], 4
      %s370 = int_to_ptr.vmem [resolvable:$true] %s369
      %375 = dma.vmem_to_hbm [thread:$0]  %s370, 256, %s5, [#allocation5], 128, 128, 8
    $region45: #{tpu_custom_call.1} parent=1 // pred_fallthru
      _
    // Predicated region
    $region46: #{tpu_custom_call.1} parent=1 // pred_check
      _
    $region47: #{tpu_custom_call.1} parent=1 // pred_check_branch
      %377 = sbr.rel (0) target = $region49
    $region48: #{tpu_custom_call.1} parent=1 // pred_region
      %378 = dma.done [#allocation5], 256
    $region49: #{tpu_custom_call.1} parent=1 // pred_fallthru
      _
    %379 = vsyncpa [#allocation4], 1
    %380 = vsyncpa [#allocation7], 1
    %381 = vsyncpa [#allocation5], 1

// kernel: tpu_custom_call.1
$region0: #{tpu_custom_call.1}
  #allocation0 [shape = 'u32[]', space=smem, size = 0x4, offset = 0x4, fixed_abs, tag = 'smem constant byte address 0x4 - core index']
  #allocation1 [shape = 'u32[144,128]{1,0:T(1,128)}', space=vmem, size = 0x12000, scoped, tag = 'internal scratch']
  #allocation2 [shape = 'f32[16,128]{1,0:T(8,128)}', space=vmem, size = 0x2000, scoped, tag = 'scratch operand']
  %s0 = inlined_call_operand.hbm [shape: f32[16,128], index: 0, kind: input, shape index: {}]
  %s1 = inlined_call_operand.hbm [shape: bf16[128,128], index: 1, kind: input, shape index: {}]
  %s2 = inlined_call_operand.vmem [shape: f32[1,128], index: 2, kind: input, shape index: {}]
  %s3 = inlined_call_operand.hbm [shape: bf16[128,128], index: 3, kind: input, shape index: {}]
  %s4 = inlined_call_operand.vmem [shape: f32[1,128], index: 4, kind: input, shape index: {}]
  %s5 = inlined_call_operand.hbm [shape: f32[16,128], index: 5, kind: output, shape index: {}]
  %s6 = sld [smem:[#allocation0]]
  $region50: #{tpu_custom_call.1} parent=0
    _
  %s8 = ssub.s32 1, %s6
  %s9 = scalar_select 0, %s8, %s6
  $region1: #{tpu_custom_call.1} parent=0
    #allocation3 [shape = 'u8[8192]{0}', space=vmem, size = 0x2000, scoped, tag = 'input window, operand 0, single buffered']
    #allocation4 [shape = 's32[1]{0}', space=sflag, size = 0x4, scoped, tag = 'scoped memory for tpu_custom_call.1']
    #allocation5 [shape = 's32[1]{0}', space=sflag, size = 0x4, scoped, tag = 'scoped memory for tpu_custom_call.1']
    #allocation6 [shape = 'u8[32768]{0}', space=vmem, size = 0x8000, scoped, tag = 'input window, operand 1, single buffered']
    #allocation7 [shape = 's32[1]{0}', space=sflag, size = 0x4, scoped, tag = 'scoped memory for tpu_custom_call.1']
    #allocation8 [shape = 'u8[32768]{0}', space=vmem, size = 0x8000, scoped, tag = 'input window, operand 3, single buffered']
    #allocation9 [shape = 'u8[8192]{0}', space=vmem, size = 0x2000, scoped, tag = 'output window, operand 0, single buffered']
    %10 = vsyncpa [#allocation4], 0
    %11 = vsyncpa [#allocation7], 0
    %12 = vsyncpa [#allocation5], 0
    // Predicated region
    $region2: #{tpu_custom_call.1} parent=1 // pred_check
      _
    $region3: #{tpu_custom_call.1} parent=1 // pred_check_branch
      %14 = sbr.rel (0) target = $region5
    $region4: #{tpu_custom_call.1} parent=1 // pred_region
      %s16 = ssub.s32 256, 256
      %17 = vsyncadd [#allocation4], %s16
      %s18 = sshll.u32 [#allocation3], 4
      %s19 = int_to_ptr.vmem [resolvable:$true] %s18
      %24 = dma.hbm_to_vmem [thread:$0]  %s0, 256, %s19, [#allocation4], 128, 128, 8
    $region5: #{tpu_custom_call.1} parent=1 // pred_fallthru
      _
    // Predicated region
    $region6: #{tpu_custom_call.1} parent=1 // pred_check
      _
    $region7: #{tpu_custom_call.1} parent=1 // pred_check_branch
      %26 = sbr.rel (0) target = $region9
    $region8: #{tpu_custom_call.1} parent=1 // pred_region
      %s28 = ssub.s32 1024, 1024
      %29 = vsyncadd [#allocation7], %s28
      %s30 = sshll.u32 [#allocation6], 4
      %s31 = int_to_ptr.vmem [resolvable:$true] %s30
      %36 = dma.hbm_to_vmem [thread:$0]  %s1, 1024, %s31, [#allocation7], 64, 64, 4
    $region9: #{tpu_custom_call.1} parent=1 // pred_fallthru
      _
    // Predicated region
    $region10: #{tpu_custom_call.1} parent=1 // pred_check
      _
    $region11: #{tpu_custom_call.1} parent=1 // pred_check_branch
      %38 = sbr.rel (0) target = $region13
    $region12: #{tpu_custom_call.1} parent=1 // pred_region
      _
    $region13: #{tpu_custom_call.1} parent=1 // pred_fallthru
      _
    // Predicated region
    $region14: #{tpu_custom_call.1} parent=1 // pred_check
      _
    $region15: #{tpu_custom_call.1} parent=1 // pred_check_branch
      %40 = sbr.rel (0) target = $region17
    $region16: #{tpu_custom_call.1} parent=1 // pred_region
      %s42 = ssub.s32 1024, 1024
      %43 = vsyncadd [#allocation7], %s42
      %s44 = sshll.u32 [#allocation8], 4
      %s45 = int_to_ptr.vmem [resolvable:$true] %s44
      %50 = dma.hbm_to_vmem [thread:$0]  %s3, 1024, %s45, [#allocation7], 64, 64, 4
    $region17: #{tpu_custom_call.1} parent=1 // pred_fallthru
      _
    // Predicated region
    $region18: #{tpu_custom_call.1} parent=1 // pred_check
      _
    $region19: #{tpu_custom_call.1} parent=1 // pred_check_branch
      %52 = sbr.rel (0) target = $region21
    $region20: #{tpu_custom_call.1} parent=1 // pred_region
      _
    $region21: #{tpu_custom_call.1} parent=1 // pred_fallthru
      _
    // Predicated region
    $region22: #{tpu_custom_call.1} parent=1 // pred_check
      _
    $region23: #{tpu_custom_call.1} parent=1 // pred_check_branch
      %54 = sbr.rel (0) target = $region25
    $region24: #{tpu_custom_call.1} parent=1 // pred_region
      %55 = dma.done [#allocation4], 256
    $region25: #{tpu_custom_call.1} parent=1 // pred_fallthru
      _
    // Predicated region
    $region26: #{tpu_custom_call.1} parent=1 // pred_check
      _
    $region27: #{tpu_custom_call.1} parent=1 // pred_check_branch
      %57 = sbr.rel (0) target = $region29
    $region28: #{tpu_custom_call.1} parent=1 // pred_region
      %58 = dma.done [#allocation7], 1024
    $region29: #{tpu_custom_call.1} parent=1 // pred_fallthru
      _
    // Predicated region
    $region30: #{tpu_custom_call.1} parent=1 // pred_check
      _
    $region31: #{tpu_custom_call.1} parent=1 // pred_check_branch
      %60 = sbr.rel (0) target = $region33
    $region32: #{tpu_custom_call.1} parent=1 // pred_region
      %61 = dma.done [#allocation7], 1024
    $region33: #{tpu_custom_call.1} parent=1 // pred_fallthru
      _
    %p63 = scmp.eq.s32.totalorder 0, 0
    // Predicated region
    $region34: #{tpu_custom_call.1} parent=1 // pred_check
      %p64 = pneg %p63
    $region35: #{tpu_custom_call.1} parent=1 // pred_check_branch
      %66 = sbr.rel (%p64) target = $region37
    $region36: #{tpu_custom_call.1} parent=1 // pred_region
      %67 = vst [vmem:[#allocation2] sm:$0xff] 0.0
      %68 = vst [vmem:[#allocation2 + $0x8] sm:$0xff] 0.0
    $region37: #{tpu_custom_call.1} parent=1 // pred_fallthru
      _
    %v69 = vld [vmem:[#allocation3] sm:$0xff]
    %v70 = vld [vmem:[#allocation3 + $0x8] sm:$0xff]
    %v71 = vpack.c.bf16 %v70, %v69
    %v72 = vld [vmem:[#allocation6] sm:$0xf]
    %v73 = vld [vmem:[#allocation6 + $0x4] sm:$0xf]
    %v74 = vld [vmem:[#allocation6 + $0x8] sm:$0xf]
    %v75 = vld [vmem:[#allocation6 + $0xc] sm:$0xf]
    %v76 = vld [vmem:[#allocation6 + $0x10] sm:$0xf]
    %v77 = vld [vmem:[#allocation6 + $0x14] sm:$0xf]
    %v78 = vld [vmem:[#allocation6 + $0x18] sm:$0xf]
    %v79 = vld [vmem:[#allocation6 + $0x1c] sm:$0xf]
    %v80 = vld [vmem:[#allocation6 + $0x20] sm:$0xf]
    %v81 = vld [vmem:[#allocation6 + $0x24] sm:$0xf]
    %v82 = vld [vmem:[#allocation6 + $0x28] sm:$0xf]
    %v83 = vld [vmem:[#allocation6 + $0x2c] sm:$0xf]
    %v84 = vld [vmem:[#allocation6 + $0x30] sm:$0xf]
    %v85 = vld [vmem:[#allocation6 + $0x34] sm:$0xf]
    %v86 = vld [vmem:[#allocation6 + $0x38] sm:$0xf]
    %v87 = vld [vmem:[#allocation6 + $0x3c] sm:$0xf]
    %v88 = vld [vmem:[%s2] sm:$0x1]
    %v90 = vlaneseq
    %v91 = vshrl.u32 %v90, 7
    %v92 = vsub.s32 0, %v91
    %v93 = vrot.slane %v88, %v92
    %v111 = vunpack.c.l.b16 %v72
    %v112 = vunpack.c.l.b16 %v73
    %v113 = vunpack.c.l.b16 %v74
    %v114 = vunpack.c.l.b16 %v75
    %v115 = vunpack.c.l.b16 %v76
    %v116 = vunpack.c.l.b16 %v77
    %v117 = vunpack.c.l.b16 %v78
    %v118 = vunpack.c.l.b16 %v79
    %v119 = vunpack.c.l.b16 %v80
    %v120 = vunpack.c.l.b16 %v81
    %v121 = vunpack.c.l.b16 %v82
    %v122 = vunpack.c.l.b16 %v83
    %v123 = vunpack.c.l.b16 %v84
    %v124 = vunpack.c.l.b16 %v85
    %v125 = vunpack.c.l.b16 %v86
    %v126 = vunpack.c.l.b16 %v87
    %v127 = vpack.c.b16 %v112, %v111
    %v128 = vpack.c.b16 %v114, %v113
    %v129 = vpack.c.b16 %v116, %v115
    %v130 = vpack.c.b16 %v118, %v117
    %v131 = vpack.c.b16 %v120, %v119
    %v132 = vpack.c.b16 %v122, %v121
    %v133 = vpack.c.b16 %v124, %v123
    %v134 = vpack.c.b16 %v126, %v125
    %143 = vmatprep.subr.bf16.mxu0 0
    %144 = vmatpush1.bf16.msra.mxu0 %v134
    %145 = vmatprep.subr.bf16.mxu0 0
    %146 = vmatpush1.bf16.msra.mxu0 %v133
    %147 = vmatprep.subr.bf16.mxu0 0
    %148 = vmatpush1.bf16.msra.mxu0 %v132
    %149 = vmatprep.subr.bf16.mxu0 0
    %150 = vmatpush1.bf16.msra.mxu0 %v131
    %151 = vmatprep.subr.bf16.mxu0 0
    %152 = vmatpush1.bf16.msra.mxu0 %v130
    %153 = vmatprep.subr.bf16.mxu0 0
    %154 = vmatpush1.bf16.msra.mxu0 %v129
    %155 = vmatprep.subr.bf16.mxu0 0
    %156 = vmatpush1.bf16.msra.mxu0 %v128
    %157 = vmatprep.subr.bf16.mxu0 0
    %158 = vmatpush1.bf16.msra.mxu0 %v127
    %159 = vmatprep.subr.bf16.mxu0 0
    %160 = vmatpush2.bf16.msra.mxu0 0
    %161 = vmatprep.subr.bf16.mxu0 0
    %162 = vmatpush2.bf16.msra.mxu0 0
    %163 = vmatprep.subr.bf16.mxu0 0
    %164 = vmatpush2.bf16.msra.mxu0 0
    %165 = vmatprep.subr.bf16.mxu0 0
    %166 = vmatpush2.bf16.msra.mxu0 0
    %167 = vmatprep.subr.bf16.mxu0 0
    %168 = vmatpush2.bf16.msra.mxu0 0
    %169 = vmatprep.subr.bf16.mxu0 0
    %170 = vmatpush2.bf16.msra.mxu0 0
    %171 = vmatprep.subr.bf16.mxu0 0
    %172 = vmatpush2.bf16.msra.mxu0 0
    %173 = vmatprep.subr.bf16.mxu0 0
    %174 = vmatpush2.bf16.msra.mxu0 0
    %175 = vmatprep.mubr.bf16.mxu0 0
    %176 = vmatmul.mubr.bf16.gmra.mxu0 %v71
    %v177 = vpop.f32.mrf.mxu0
    %v178 = vadd.f32 %v93, %v177
    %v179 = vpop.f32.mrf.mxu0
    %v180 = vpop.f32.mrf.mxu0
    %v181 = vadd.f32 %v93, %v180
    %v182 = vpop.f32.mrf.mxu0
    %183 = vdwg.mxu0
    %v184 = vmul.f32 %v178, 0.5
    %v185 = vmul.f32 %v181, 0.5
    %v186 = vmul.f32 %v178, 0.70710677
    %v187 = vmul.f32 %v181, 0.70710677
    %v188 = vand.u32 2147483647, %v186
    %v189 = vand.u32 2147483647, %v187
    %v190 = vmul.f32 %v188, 0.3275911
    %v191 = vmul.f32 %v189, 0.3275911
    %v192 = vadd.f32 %v190, 1.0
    %v193 = vadd.f32 %v191, 1.0
    %v194 = vrcp.pop %v192
    %v195 = vrcp.pop %v193
    %v196 = vmul.f32 %v194, 1.0614054
    %v197 = vmul.f32 %v195, 1.0614054
    %v198 = vadd.f32 %v196, -1.4531521
    %v199 = vadd.f32 %v197, -1.4531521
    %v200 = vmul.f32 %v198, %v194
    %v201 = vmul.f32 %v199, %v195
    %v202 = vadd.f32 %v200, 1.4214138
    %v203 = vadd.f32 %v201, 1.4214138
    %v204 = vmul.f32 %v202, %v194
    %v205 = vmul.f32 %v203, %v195
    %v206 = vadd.f32 %v204, -0.28449672
    %v207 = vadd.f32 %v205, -0.28449672
    %v208 = vmul.f32 %v206, %v194
    %v209 = vmul.f32 %v207, %v195
    %v210 = vadd.f32 %v208, 0.2548296
    %v211 = vadd.f32 %v209, 0.2548296
    %v212 = vmul.f32 %v210, %v194
    %v213 = vmul.f32 %v211, %v195
    %v214 = vsub.f32 0.0, %v188
    %v215 = vsub.f32 0.0, %v189
    %v216 = vmul.f32 %v214, %v188
    %v217 = vmul.f32 %v215, %v189
    %v218 = vmul.f32 %v216, 1.442695
    %v219 = vpow.pop %v218
    %v220 = vmul.f32 %v217, 1.442695
    %v221 = vpow.pop %v220
    %v222 = vmul.f32 %v212, %v219
    %v223 = vmul.f32 %v213, %v221
    %v224 = vsub.f32 1.0, %v222
    %v225 = vsub.f32 1.0, %v223
    %vm226 = vcmp.ge.f32.partialorder %v186, 0.0
    %vm227 = vcmp.ge.f32.partialorder %v187, 0.0
    %v228 = vsub.f32 0.0, %v224
    %v229 = vsub.f32 0.0, %v225
    %v230 = vsel %vm226, %v224, %v228
    %v231 = vsel %vm227, %v225, %v229
    %v232 = vadd.f32 %v230, 1.0
    %v233 = vadd.f32 %v231, 1.0
    %v234 = vmul.f32 %v184, %v232
    %v235 = vmul.f32 %v185, %v233
    %v236 = vld [vmem:[#allocation2] sm:$0xff]
    %v237 = vld [vmem:[#allocation2 + $0x8] sm:$0xff]
    %v238 = vpack.c.bf16 %v235, %v234
    %v239 = vld [vmem:[#allocation8] sm:$0xf]
    %v240 = vld [vmem:[#allocation8 + $0x4] sm:$0xf]
    %v241 = vld [vmem:[#allocation8 + $0x8] sm:$0xf]
    %v242 = vld [vmem:[#allocation8 + $0xc] sm:$0xf]
    %v243 = vld [vmem:[#allocation8 + $0x10] sm:$0xf]
    %v244 = vld [vmem:[#allocation8 + $0x14] sm:$0xf]
    %v245 = vld [vmem:[#allocation8 + $0x18] sm:$0xf]
    %v246 = vld [vmem:[#allocation8 + $0x1c] sm:$0xf]
    %v247 = vld [vmem:[#allocation8 + $0x20] sm:$0xf]
    %v248 = vld [vmem:[#allocation8 + $0x24] sm:$0xf]
    %v249 = vld [vmem:[#allocation8 + $0x28] sm:$0xf]
    %v250 = vld [vmem:[#allocation8 + $0x2c] sm:$0xf]
    %v251 = vld [vmem:[#allocation8 + $0x30] sm:$0xf]
    %v252 = vld [vmem:[#allocation8 + $0x34] sm:$0xf]
    %v253 = vld [vmem:[#allocation8 + $0x38] sm:$0xf]
    %v254 = vld [vmem:[#allocation8 + $0x3c] sm:$0xf]
    %v271 = vunpack.c.l.b16 %v239
    %v272 = vunpack.c.l.b16 %v240
    %v273 = vunpack.c.l.b16 %v241
    %v274 = vunpack.c.l.b16 %v242
    %v275 = vunpack.c.l.b16 %v243
    %v276 = vunpack.c.l.b16 %v244
    %v277 = vunpack.c.l.b16 %v245
    %v278 = vunpack.c.l.b16 %v246
    %v279 = vunpack.c.l.b16 %v247
    %v280 = vunpack.c.l.b16 %v248
    %v281 = vunpack.c.l.b16 %v249
    %v282 = vunpack.c.l.b16 %v250
    %v283 = vunpack.c.l.b16 %v251
    %v284 = vunpack.c.l.b16 %v252
    %v285 = vunpack.c.l.b16 %v253
    %v286 = vunpack.c.l.b16 %v254
    %v287 = vpack.c.b16 %v272, %v271
    %v288 = vpack.c.b16 %v274, %v273
    %v289 = vpack.c.b16 %v276, %v275
    %v290 = vpack.c.b16 %v278, %v277
    %v291 = vpack.c.b16 %v280, %v279
    %v292 = vpack.c.b16 %v282, %v281
    %v293 = vpack.c.b16 %v284, %v283
    %v294 = vpack.c.b16 %v286, %v285
    %303 = vmatprep.subr.bf16.mxu0 0
    %304 = vmatpush1.bf16.msra.mxu0 %v294
    %305 = vmatprep.subr.bf16.mxu0 0
    %306 = vmatpush1.bf16.msra.mxu0 %v293
    %307 = vmatprep.subr.bf16.mxu0 0
    %308 = vmatpush1.bf16.msra.mxu0 %v292
    %309 = vmatprep.subr.bf16.mxu0 0
    %310 = vmatpush1.bf16.msra.mxu0 %v291
    %311 = vmatprep.subr.bf16.mxu0 0
    %312 = vmatpush1.bf16.msra.mxu0 %v290
    %313 = vmatprep.subr.bf16.mxu0 0
    %314 = vmatpush1.bf16.msra.mxu0 %v289
    %315 = vmatprep.subr.bf16.mxu0 0
    %316 = vmatpush1.bf16.msra.mxu0 %v288
    %317 = vmatprep.subr.bf16.mxu0 0
    %318 = vmatpush1.bf16.msra.mxu0 %v287
    %319 = vmatprep.subr.bf16.mxu0 0
    %320 = vmatpush2.bf16.msra.mxu0 0
    %321 = vmatprep.subr.bf16.mxu0 0
    %322 = vmatpush2.bf16.msra.mxu0 0
    %323 = vmatprep.subr.bf16.mxu0 0
    %324 = vmatpush2.bf16.msra.mxu0 0
    %325 = vmatprep.subr.bf16.mxu0 0
    %326 = vmatpush2.bf16.msra.mxu0 0
    %327 = vmatprep.subr.bf16.mxu0 0
    %328 = vmatpush2.bf16.msra.mxu0 0
    %329 = vmatprep.subr.bf16.mxu0 0
    %330 = vmatpush2.bf16.msra.mxu0 0
    %331 = vmatprep.subr.bf16.mxu0 0
    %332 = vmatpush2.bf16.msra.mxu0 0
    %333 = vmatprep.subr.bf16.mxu0 0
    %334 = vmatpush2.bf16.msra.mxu0 0
    %335 = vmatprep.mubr.bf16.mxu0 0
    %336 = vmatmul.mubr.bf16.gmra.mxu0 %v238
    %v337 = vpop.f32.mrf.mxu0
    %v338 = vadd.f32 0.0, %v337
    %v339 = vpop.f32.mrf.mxu0
    %v340 = vpop.f32.mrf.mxu0
    %v341 = vadd.f32 0.0, %v340
    %v342 = vpop.f32.mrf.mxu0
    %343 = vdwg.mxu0
    %v344 = vadd.f32 %v236, %v338
    %v345 = vadd.f32 %v237, %v341
    %346 = vst [vmem:[#allocation2] sm:$0xff] %v344
    %347 = vst [vmem:[#allocation2 + $0x8] sm:$0xff] %v345
    // Predicated region
    $region38: #{tpu_custom_call.1} parent=1 // pred_check
      %p348 = pneg %p63
    $region39: #{tpu_custom_call.1} parent=1 // pred_check_branch
      %350 = sbr.rel (%p348) target = $region41
    $region40: #{tpu_custom_call.1} parent=1 // pred_region
      %v351 = vld [vmem:[#allocation2] sm:$0xff]
      %v352 = vld [vmem:[#allocation2 + $0x8] sm:$0xff]
      %v353 = vld [vmem:[%s4] sm:$0x1]
      %v355 = vlaneseq
      %v356 = vshrl.u32 %v355, 7
      %v357 = vsub.s32 0, %v356
      %v358 = vrot.slane %v353, %v357
      %v360 = vadd.f32 %v351, %v358
      %v361 = vadd.f32 %v352, %v358
      %362 = vst [vmem:[#allocation9] sm:$0xff] %v360
      %363 = vst [vmem:[#allocation9 + $0x8] sm:$0xff] %v361
    $region41: #{tpu_custom_call.1} parent=1 // pred_fallthru
      _
    // Predicated region
    $region42: #{tpu_custom_call.1} parent=1 // pred_check
      _
    $region43: #{tpu_custom_call.1} parent=1 // pred_check_branch
      %365 = sbr.rel (0) target = $region45
    $region44: #{tpu_custom_call.1} parent=1 // pred_region
      %s367 = ssub.s32 256, 256
      %368 = vsyncadd [#allocation5], %s367
      %s369 = sshll.u32 [#allocation9], 4
      %s370 = int_to_ptr.vmem [resolvable:$true] %s369
      %375 = dma.vmem_to_hbm [thread:$0]  %s370, 256, %s5, [#allocation5], 128, 128, 8
    $region45: #{tpu_custom_call.1} parent=1 // pred_fallthru
      _
    // Predicated region
    $region46: #{tpu_custom_call.1} parent=1 // pred_check
      _
    $region47: #{tpu_custom_call.1} parent=1 // pred_check_branch
      %377 = sbr.rel (0) target = $region49
    $region48: #{tpu_custom_call.1} parent=1 // pred_region
      %378 = dma.done [#allocation5], 256
    $region49: #{tpu_custom_call.1} parent=1 // pred_fallthru
      _
    %379 = vsyncpa [#allocation4], 1
    %380 = vsyncpa [#allocation7], 1
    %381 = vsyncpa [#allocation5], 1

</llo_original>
